<compile_context>
chip_gen: v6e
topology: v6e:2x2x1
jax: 0.10.0
libtpu: 0.0.40
codegen_flags: <defaults>
</compile_context>

<pallas_src>
import numpy as np
import jax
import jax.numpy as jnp
from jax import lax
from jax.experimental import pallas as pl
from jax.experimental.pallas import tpu as pltpu

NEG_SLOPE = 0.01               # F.leaky_relu default
LANE = 128                     # pad all feature dims to lane width
TILE_N = 512                   # node tile (rows and A-contraction), MXU-aligned
VMEM_LIMIT = 48 * 1024 * 1024  # explicit budget; honors v7x's 64 MiB/TC cap


def _rup(n, m):
    return ((n + m - 1) // m) * m


def _leaky(v):
    return jnp.where(v >= 0, v, NEG_SLOPE * v)


# ----------------------------- Pallas kernels ------------------------------

def linear_kernel(x_ref, w_ref, b_ref, o_ref):
    # y = x @ W + b   (W pre-transposed to (in, out))
    o_ref[...] = (jnp.dot(x_ref[...], w_ref[...],
                          preferred_element_type=jnp.float32)
                  + b_ref[...]).astype(o_ref.dtype)


def make_gcn_pair_kernel(normalize, fuse_avg):
    """Fused dual-modality GCN layer (concate=False, has_id=True).

    Per node-row tile i (visited via a flat list of nonzero A blocks):
      h_m     = leaky( (A @ x_m) Wc_m + deg * bc_m )          m in {v, t}
      u_hat_m = leaky( x_m Wl_m + bl_m ) + id_embedding
      out_m   = leaky( h_m Wg_m + bg_m + u_hat_m )
    If fuse_avg: out = (out_v + out_t) / 2 (single f32 output).
    If normalize: x tiles are L2-normalized in-kernel (fused F.normalize).
    """

    def load_x(ref):
        if normalize:
            x = ref[...].astype(jnp.float32)
            ss = jnp.sum(x * x, axis=1, keepdims=True)
            return (x * lax.rsqrt(jnp.maximum(ss, 1e-24))).astype(jnp.bfloat16)
        return ref[...].astype(jnp.bfloat16)

    def kernel(brow_ref, bcol_ref, bslot_ref, bfirst_ref, blast_ref, bvalid_ref,
               a_ref, xvk_ref, xtk_ref, xvi_ref, xti_ref, deg_ref, id_ref,
               wcv_ref, bcv_ref, wlv_ref, blv_ref, wgv_ref, bgv_ref,
               wct_ref, bct_ref, wlt_ref, blt_ref, wgt_ref, bgt_ref,
               *rest):
        if fuse_avg:
            o_ref = rest[0]
            accv_ref, acct_ref, uv_ref, ut_ref = rest[1:]
        else:
            ov_ref, ot_ref = rest[0], rest[1]
            accv_ref, acct_ref, uv_ref, ut_ref = rest[2:]

        s = pl.program_id(0)

        # First block of a row tile: zero both accumulators and compute the
        # k-independent u_hat into VMEM scratch (overlaps the DMA-bound
        # accumulation instead of lengthening the serialized epilogue).
        @pl.when(bfirst_ref[s] == 1)
        def _():
            accv_ref[...] = jnp.zeros_like(accv_ref)
            acct_ref[...] = jnp.zeros_like(acct_ref)
            xv = load_x(xvi_ref)
            xt = load_x(xti_ref)
            uv_ref[...] = _leaky(
                jnp.dot(xv, wlv_ref[...], preferred_element_type=jnp.float32)
                + blv_ref[...]) + id_ref[...]
            ut_ref[...] = _leaky(
                jnp.dot(xt, wlt_ref[...], preferred_element_type=jnp.float32)
                + blt_ref[...]) + id_ref[...]

        # One fetch of the A block feeds BOTH modality accumulators.
        @pl.when(bvalid_ref[s] == 1)
        def _():
            a = a_ref[0]
            accv_ref[...] += jnp.dot(a, load_x(xvk_ref),
                                     preferred_element_type=jnp.float32)
            acct_ref[...] += jnp.dot(a, load_x(xtk_ref),
                                     preferred_element_type=jnp.float32)

        # Last block of a row tile: conv-linear + g_layer epilogue, optionally
        # fused with the final (v + t) / 2 average.
        @pl.when(blast_ref[s] == 1)
        def _():
            deg = deg_ref[...]
            hv = _leaky(jnp.dot(accv_ref[...].astype(jnp.bfloat16), wcv_ref[...],
                                preferred_element_type=jnp.float32)
                        + deg * bcv_ref[...]).astype(jnp.bfloat16)
            ht = _leaky(jnp.dot(acct_ref[...].astype(jnp.bfloat16), wct_ref[...],
                                preferred_element_type=jnp.float32)
                        + deg * bct_ref[...]).astype(jnp.bfloat16)
            ov = _leaky(jnp.dot(hv, wgv_ref[...],
                                preferred_element_type=jnp.float32)
                        + bgv_ref[...] + uv_ref[...])
            ot = _leaky(jnp.dot(ht, wgt_ref[...],
                                preferred_element_type=jnp.float32)
                        + bgt_ref[...] + ut_ref[...])
            if fuse_avg:
                o_ref[...] = ((ov + ot) * 0.5).astype(o_ref.dtype)
            else:
                ov_ref[...] = ov.astype(ov_ref.dtype)
                ot_ref[...] = ot.astype(ot_ref.dtype)

    return kernel


# ----------------------------- pallas_call glue -----------------------------

def linear(x, w, b, out_dtype=jnp.float32):
    # x: (R, Din) f32, w: (Din, Dout) bf16 pre-transposed, b: (1, Dout) f32
    r, din = x.shape
    dout = w.shape[1]
    tm = min(1024, _rup(max(r, 8), 8))        # large mem-bound-friendly row tile
    rp = _rup(r, tm)
    xp = jnp.pad(x, ((0, rp - r), (0, 0))).astype(jnp.bfloat16)
    out = pl.pallas_call(
        linear_kernel,
        out_shape=jax.ShapeDtypeStruct((rp, dout), out_dtype),
        grid=(rp // tm,),
        in_specs=[pl.BlockSpec((tm, din), lambda i: (i, 0)),
                  pl.BlockSpec((din, dout), lambda i: (0, 0)),
                  pl.BlockSpec((1, dout), lambda i: (0, 0))],
        out_specs=pl.BlockSpec((tm, dout), lambda i: (i, 0)),
        compiler_params=pltpu.CompilerParams(
            dimension_semantics=("parallel",), vmem_limit_bytes=VMEM_LIMIT),
    )(xp, w, b)
    return out[:r]


def gcn_layer_pair(xv, xt, a_blocks, deg, sched, n_valid, id_emb, pv, pt,
                   normalize, fuse_avg):
    """One fused GCN layer for BOTH modalities in a single pallas_call."""
    n, dv = xv.shape
    _, dt = xt.shape
    dout = pv["wl"].shape[1]
    nt = n // TILE_N
    brow, bcol, bslot, bfirst, blast, bvalid = sched
    S = int(brow.shape[0])

    kernel = make_gcn_pair_kernel(normalize, fuse_avg)

    row_map = lambda s, br, bc, bs, *_: (br[s], 0)      # row-tile indexed
    col_map = lambda s, br, bc, bs, *_: (bc[s], 0)      # contraction-tile indexed
    slot_map = lambda s, br, bc, bs, *_: (bs[s], 0, 0)  # packed A block
    rep_map = lambda s, *_: (0, 0)                      # broadcast (weights)

    in_specs = [
        pl.BlockSpec((1, TILE_N, TILE_N), slot_map),    # packed A block
        pl.BlockSpec((TILE_N, dv), col_map),            # x_v (contraction tile)
        pl.BlockSpec((TILE_N, dt), col_map),            # x_t (contraction tile)
        pl.BlockSpec((TILE_N, dv), row_map),            # x_v (row tile, u_hat)
        pl.BlockSpec((TILE_N, dt), row_map),            # x_t (row tile, u_hat)
        pl.BlockSpec((TILE_N, 1), row_map),             # deg = rowsum(A)
        pl.BlockSpec((TILE_N, dout), row_map),          # id_embedding
        pl.BlockSpec((dv, dv), rep_map), pl.BlockSpec((1, dv), rep_map),      # Wc_v, bc_v
        pl.BlockSpec((dv, dout), rep_map), pl.BlockSpec((1, dout), rep_map),  # Wl_v, bl_v
        pl.BlockSpec((dv, dout), rep_map), pl.BlockSpec((1, dout), rep_map),  # Wg_v, bg_v
        pl.BlockSpec((dt, dt), rep_map), pl.BlockSpec((1, dt), rep_map),      # Wc_t, bc_t
        pl.BlockSpec((dt, dout), rep_map), pl.BlockSpec((1, dout), rep_map),  # Wl_t, bl_t
        pl.BlockSpec((dt, dout), rep_map), pl.BlockSpec((1, dout), rep_map),  # Wg_t, bg_t
    ]

    if fuse_avg:
        out_shape = jax.ShapeDtypeStruct((n, dout), jnp.float32)
        out_specs = pl.BlockSpec((TILE_N, dout), row_map)
        out_bytes = n * dout * 4
    else:
        out_shape = (jax.ShapeDtypeStruct((n, dout), jnp.bfloat16),
                     jax.ShapeDtypeStruct((n, dout), jnp.bfloat16))
        out_specs = (pl.BlockSpec((TILE_N, dout), row_map),
                     pl.BlockSpec((TILE_N, dout), row_map))
        out_bytes = 2 * n * dout * 2

    xbytes = jnp.dtype(xv.dtype).itemsize
    flops = int(2 * n_valid * TILE_N * TILE_N * (dv + dt)
                + 2 * n * (dv * dv + dt * dt + 2 * dv * dout + 2 * dt * dout))
    transc = int((n_valid + nt) * TILE_N * 2) if normalize else 0
    bytes_accessed = int(
        n_valid * TILE_N * TILE_N * 2
        + (n_valid + nt) * TILE_N * (dv + dt) * xbytes
        + nt * TILE_N * (4 + dout * 4)
        + (dv * dv + dt * dt + 2 * dv * dout + 2 * dt * dout) * 2
        + out_bytes)

    return pl.pallas_call(
        kernel,
        out_shape=out_shape,
        grid_spec=pltpu.PrefetchScalarGridSpec(
            num_scalar_prefetch=6,
            grid=(S,),
            in_specs=in_specs,
            out_specs=out_specs,
            scratch_shapes=[pltpu.VMEM((TILE_N, dv), jnp.float32),   # acc_v
                            pltpu.VMEM((TILE_N, dt), jnp.float32),   # acc_t
                            pltpu.VMEM((TILE_N, dout), jnp.float32), # u_hat_v
                            pltpu.VMEM((TILE_N, dout), jnp.float32)],# u_hat_t
        ),
        compiler_params=pltpu.CompilerParams(
            dimension_semantics=("arbitrary",),   # output row tile is revisited
            vmem_limit_bytes=VMEM_LIMIT),
        cost_estimate=pl.CostEstimate(flops=flops, transcendentals=transc,
                                      bytes_accessed=bytes_accessed),
    )(brow, bcol, bslot, bfirst, blast, bvalid,
      a_blocks, xv, xt, xv, xt, deg, id_emb,
      pv["wc"], pv["bc"], pv["wl"], pv["bl"], pv["wg"], pv["bg"],
      pt["wc"], pt["bc"], pt["wl"], pt["bl"], pt["wg"], pt["bg"])


# ---------------------------- adjacency helpers ------------------------------

def build_block_schedule(a_np, tile):
    """Pack nonzero TILExTILE adjacency blocks and build the flat block list.

    Returns:
      a_blocks: (num_nnz_blocks, tile, tile) bf16 packed nonzero A blocks.
      sched:    6 int32 arrays (row, col, slot, first, last, valid) of length S,
                grouped row-major; rows with zero nonzero blocks get one dummy
                (valid=0) entry so init/epilogue still run for them.
      n_valid:  number of real (valid=1) blocks.
    """
    n = a_np.shape[0]
    nt = n // tile
    brow, bcol, bslot, bfirst, blast, bvalid = [], [], [], [], [], []
    packed = []
    for i in range(nt):
        nz = [k for k in range(nt)
              if np.any(a_np[i * tile:(i + 1) * tile, k * tile:(k + 1) * tile])]
        if not nz:
            brow.append(i); bcol.append(0); bslot.append(0)
            bfirst.append(1); blast.append(1); bvalid.append(0)
        else:
            for j, k in enumerate(nz):
                brow.append(i); bcol.append(k); bslot.append(len(packed))
                bfirst.append(1 if j == 0 else 0)
                blast.append(1 if j == len(nz) - 1 else 0)
                bvalid.append(1)
                packed.append(a_np[i * tile:(i + 1) * tile,
                                   k * tile:(k + 1) * tile])
    if not packed:
        packed.append(np.zeros((tile, tile), np.float32))
    a_blocks = jnp.asarray(np.stack(packed), jnp.bfloat16)  # int counts -> exact
    sched = tuple(jnp.asarray(np.asarray(v, np.int32))
                  for v in (brow, bcol, bslot, bfirst, blast, bvalid))
    return a_blocks, sched, int(np.sum(bvalid))


# ----------------------------- parameter setup ------------------------------

def xavier_normal(key, shape):
    fan_out, fan_in = shape
    std = float(np.sqrt(2.0 / (fan_in + fan_out)))
    return jax.random.normal(key, shape, jnp.float32) * std


def xavier_linear_weight_T(key, din, dout, din_p, dout_p):
    # nn.Linear weight is (out, in); xavier_normal std = sqrt(2/(in+out)).
    # Stored pre-transposed (in, out), zero-padded to lane-aligned dims, bf16.
    std = float(np.sqrt(2.0 / (din + dout)))
    w = jax.random.normal(key, (din, dout), jnp.float32) * std
    return jnp.pad(w, ((0, din_p - din), (0, dout_p - dout))).astype(jnp.bfloat16)


def linear_bias(key, din, dout, dout_p):
    bound = 1.0 / float(np.sqrt(din))          # nn.Linear default bias init
    b = jax.random.uniform(key, (1, dout), jnp.float32, -bound, bound)
    return jnp.pad(b, ((0, 0), (0, dout_p - dout)))


def make_gcn_params(key, num_user, dim_feat, dim_id, dim_latent):
    dfp = _rup(dim_feat, LANE)
    dip = _rup(dim_id, LANE)
    keys = iter(jax.random.split(key, 64))
    p = {}
    if dim_latent is not None:
        dlp = _rup(dim_latent, LANE)
        pref = xavier_normal(next(keys), (num_user, dim_latent))
        p["preference"] = jnp.pad(pref, ((0, 0), (0, dlp - dim_latent)))
        p["mlp_w"] = xavier_linear_weight_T(next(keys), dim_feat, dim_latent, dfp, dlp)
        p["mlp_b"] = linear_bias(next(keys), dim_feat, dim_latent, dlp)
        d0, d0p = dim_latent, dlp
    else:
        pref = xavier_normal(next(keys), (num_user, dim_feat))
        p["preference"] = jnp.pad(pref, ((0, 0), (0, dfp - dim_feat)))
        p["mlp_w"] = None
        p["mlp_b"] = None
        d0, d0p = dim_feat, dfp

    layers = []
    dims = [(d0, d0p)] + [(dim_id, dip)] * 3
    for (din, dinp) in dims:
        layers.append(dict(
            wc=xavier_linear_weight_T(next(keys), din, din, dinp, dinp),
            bc=linear_bias(next(keys), din, din, dinp),
            wl=xavier_linear_weight_T(next(keys), din, dim_id, dinp, dip),
            bl=linear_bias(next(keys), din, dim_id, dip),
            wg=xavier_linear_weight_T(next(keys), din, dim_id, dinp, dip),
            bg=linear_bias(next(keys), din, dim_id, dip),
        ))
    p["layers"] = layers
    return p


# ------------------------------ model forward -------------------------------

def mmgcn_forward(v_feat, t_feat, id_emb, a_blocks, deg, sched, n_valid,
                  v_params, t_params, n_nodes, dim_x, npad):
    def build_x(feat, params):
        # temp_features = MLP(features) if dim_latent else features
        temp = (linear(feat, params["mlp_w"], params["mlp_b"])
                if params["mlp_w"] is not None else feat)
        # x = cat(preference, temp_features, dim=0), padded to npad rows;
        # F.normalize is fused into the first GCN layer kernel.
        x = jnp.concatenate([params["preference"], temp], axis=0)
        return jnp.pad(x, ((0, npad - x.shape[0]), (0, 0)))

    xv = build_x(v_feat, v_params)     # f32 (npad, dim_latent_pad)
    xt = build_x(t_feat, t_params)     # f32 (npad, dim_feat_t_pad)

    n_layers = len(v_params["layers"])
    rep = None
    for li in range(n_layers):
        out = gcn_layer_pair(xv, xt, a_blocks, deg, sched, n_valid, id_emb,
                             v_params["layers"][li], t_params["layers"][li],
                             normalize=(li == 0),
                             fuse_avg=(li == n_layers - 1))
        if li == n_layers - 1:
            rep = out                  # fused (v_rep + t_rep) / 2, f32
        else:
            xv, xt = out               # bf16 activations for next layer
    return rep[:n_nodes, :dim_x]


# ----------------------------------- main -----------------------------------

if __name__ == "__main__":
    # small synthetic configuration
    num_user, num_item = 8, 8
    n_nodes = num_user + num_item
    dim_v, dim_t = 64, 32          # raw modality feature dims
    dim_x = 32                     # dim_id
    dim_latent = 64                # v_gcn latent dim (stand-in for 256)

    dvp, dtp = _rup(dim_v, LANE), _rup(dim_t, LANE)
    dxp = _rup(dim_x, LANE)
    npad = _rup(n_nodes, TILE_N)

    key = jax.random.PRNGKey(0)
    k_v, k_t, k_id, k_pv, k_pt = jax.random.split(key, 5)

    v_feat = jnp.pad(jax.random.normal(k_v, (num_item, dim_v), jnp.float32),
                     ((0, 0), (0, dvp - dim_v)))
    t_feat = jnp.pad(jax.random.normal(k_t, (num_item, dim_t), jnp.float32),
                     ((0, 0), (0, dtp - dim_t)))
    id_embedding = jnp.pad(xavier_normal(k_id, (n_nodes, dim_x)),
                           ((0, npad - n_nodes), (0, dxp - dim_x)))

    # synthetic user->item interactions; item indices offset by num_user
    rng = np.random.RandomState(0)
    pairs = []
    for u in range(num_user):
        for it in rng.choice(num_item, size=3, replace=False):
            pairs.append((u, num_user + int(it)))
    pairs = np.asarray(pairs, dtype=np.int64)                          # (E, 2)
    edge_index = np.concatenate([pairs.T, pairs.T[[1, 0]]], axis=1)    # bidir

    # dense adjacency for aggr='add': A[dst, src] += 1 (messages src -> dst),
    # then packed into nonzero TILE_N x TILE_N blocks + a flat block schedule.
    A_np = np.zeros((npad, npad), dtype=np.float32)
    np.add.at(A_np, (edge_index[1], edge_index[0]), 1.0)
    deg = jnp.asarray(A_np.sum(axis=1, keepdims=True), jnp.float32)    # rowsum(A)
    a_blocks, sched, n_valid = build_block_schedule(A_np, TILE_N)

    v_params = make_gcn_params(k_pv, num_user, dim_v, dim_x, dim_latent)
    t_params = make_gcn_params(k_pt, num_user, dim_t, dim_x, None)

    representation = mmgcn_forward(v_feat, t_feat, id_embedding,
                                   a_blocks, deg, sched, n_valid,
                                   v_params, t_params, n_nodes, dim_x, npad)
    representation = jax.block_until_ready(representation)

    assert representation.shape == (n_nodes, dim_x)
    assert bool(jnp.all(jnp.isfinite(representation)))
    print("KERNEL_OK")
</pallas_src>

<mosaic_0001>
module attributes {stable_mosaic.version = 11 : i64} {
  func.func @linear_kernel(%arg0: i32, %arg1: memref<8x128xbf16, #tpu.memory_space<vmem>>, %arg2: memref<128x128xbf16, #tpu.memory_space<vmem>>, %arg3: memref<1x128xf32, #tpu.memory_space<vmem>>, %arg4: memref<8x128xf32, #tpu.memory_space<vmem>>) attributes {dimension_semantics = [#tpu.dimension_semantics<parallel>], iteration_bounds = array<i64: 1>, scalar_prefetch = 0 : i64, scratch_operands = 0 : i64, tpu.core_type = #tpu.core_type<tc>, window_params = [{transform_indices = @transform_0, window_bounds = array<i64: 8, 128>}, {pipeline_mode = #tpu.pipeline_mode<synchronous>, transform_indices = @transform_1, window_bounds = array<i64: 128, 128>}, {pipeline_mode = #tpu.pipeline_mode<synchronous>, transform_indices = @transform_2, window_bounds = array<i64: 1, 128>}, {transform_indices = @transform_3, window_bounds = array<i64: 8, 128>}]} {
    %c0 = arith.constant 0 : index
    %c0_0 = arith.constant 0 : index
    %0 = vector.load %arg1[%c0, %c0_0] : memref<8x128xbf16, #tpu.memory_space<vmem>>, vector<8x128xbf16>
    %c0_1 = arith.constant 0 : index
    %c0_2 = arith.constant 0 : index
    %1 = vector.load %arg2[%c0_1, %c0_2] : memref<128x128xbf16, #tpu.memory_space<vmem>>, vector<128x128xbf16>
    %cst = arith.constant dense<0.000000e+00> : vector<8x128xf32>
    %2 = tpu.matmul %0, %1, %cst {dimension_numbers = #tpu.dot_dimension_numbers<[1], [0], [0], [1], [0, 0, 1, 1], [], []>} : vector<8x128xbf16>, vector<128x128xbf16>, vector<8x128xf32> -> vector<8x128xf32>
    %c0_3 = arith.constant 0 : index
    %c0_4 = arith.constant 0 : index
    %3 = vector.load %arg3[%c0_3, %c0_4] : memref<1x128xf32, #tpu.memory_space<vmem>>, vector<1x128xf32>
    %4 = vector.broadcast %3 : vector<1x128xf32> to vector<8x128xf32>
    %5 = arith.addf %2, %4 : vector<8x128xf32>
    %c0_5 = arith.constant 0 : index
    %c0_6 = arith.constant 0 : index
    %6 = vector.load %arg4[%c0_5, %c0_6] : memref<8x128xf32, #tpu.memory_space<vmem>>, vector<8x128xf32>
    tpu.vector_store %arg4[%c0_5, %c0_6], %5 {strides = array<i32>} : memref<8x128xf32, #tpu.memory_space<vmem>>, vector<8x128xf32>,
    return
  }
  func.func @transform_0(%arg0: i32) -> (i32, i32) {
    %c0_i32 = arith.constant 0 : i32
    %c0_i32_0 = arith.constant 0 : i32
    return %arg0, %c0_i32 : i32, i32
  }
  func.func @transform_1(%arg0: i32) -> (i32, i32) {
    %c0_i32 = arith.constant 0 : i32
    %c0_i32_0 = arith.constant 0 : i32
    %c0_i32_1 = arith.constant 0 : i32
    return %c0_i32, %c0_i32_0 : i32, i32
  }
  func.func @transform_2(%arg0: i32) -> (i32, i32) {
    %c0_i32 = arith.constant 0 : i32
    %c0_i32_0 = arith.constant 0 : i32
    %c0_i32_1 = arith.constant 0 : i32
    return %c0_i32, %c0_i32_0 : i32, i32
  }
  func.func @transform_3(%arg0: i32) -> (i32, i32) {
    %c0_i32 = arith.constant 0 : i32
    %c0_i32_0 = arith.constant 0 : i32
    return %arg0, %c0_i32 : i32, i32
  }
}

</mosaic_0001>

<llo_original>
// kernel: tpu_custom_call.1
$region0: #{tpu_custom_call.1}
  #allocation0 [shape = 'u32[]', space=smem, size = 0x4, offset = 0x4, fixed_abs, tag = 'smem constant byte address 0x4 - core index']
  #allocation1 [shape = 'u32[144,128]{1,0:T(1,128)}', space=vmem, size = 0x12000, scoped, tag = 'internal scratch']
  %s0 = inlined_call_operand.hbm [shape: bf16[8,128], index: 0, kind: input, shape index: {}]
  %s1 = inlined_call_operand.hbm [shape: bf16[128,128], index: 1, kind: input, shape index: {}]
  %s2 = inlined_call_operand.vmem [shape: f32[1,128], index: 2, kind: input, shape index: {}]
  %s3 = inlined_call_operand.hbm [shape: f32[8,128], index: 3, kind: output, shape index: {}]
  %s4 = sld [smem:[#allocation0]]
  $region30: #{tpu_custom_call.1} parent=0
    _
  %s6 = ssub.s32 1, %s4
  %s7 = scalar_select 0, %s6, %s4
  $region1: #{tpu_custom_call.1} parent=0
    #allocation2 [shape = 'u8[2048]{0}', space=vmem, size = 0x800, scoped, tag = 'input window, operand 0, single buffered']
    #allocation3 [shape = 's32[1]{0}', space=sflag, size = 0x4, scoped, tag = 'scoped memory for tpu_custom_call.1']
    #allocation4 [shape = 's32[1]{0}', space=sflag, size = 0x4, scoped, tag = 'scoped memory for tpu_custom_call.1']
    #allocation5 [shape = 'u8[32768]{0}', space=vmem, size = 0x8000, scoped, tag = 'input window, operand 1, single buffered']
    #allocation6 [shape = 's32[1]{0}', space=sflag, size = 0x4, scoped, tag = 'scoped memory for tpu_custom_call.1']
    #allocation7 [shape = 'u8[4096]{0}', space=vmem, size = 0x1000, scoped, tag = 'output window, operand 0, single buffered']
    %8 = vsyncpa [#allocation3], 0
    %9 = vsyncpa [#allocation6], 0
    %10 = vsyncpa [#allocation4], 0
    // Predicated region
    $region2: #{tpu_custom_call.1} parent=1 // pred_check
      _
    $region3: #{tpu_custom_call.1} parent=1 // pred_check_branch
      %12 = sbr.rel (0) target = $region5
    $region4: #{tpu_custom_call.1} parent=1 // pred_region
      %s14 = ssub.s32 64, 64
      %15 = vsyncadd [#allocation3], %s14
      %s17 = sshll.u32 [#allocation2], 4
      %s18 = int_to_ptr.vmem [resolvable:$true] %s17
      %20 = dma.hbm_to_vmem [thread:$0]  %s0, 64, %s18, [#allocation3]
    $region5: #{tpu_custom_call.1} parent=1 // pred_fallthru
      _
    // Predicated region
    $region6: #{tpu_custom_call.1} parent=1 // pred_check
      _
    $region7: #{tpu_custom_call.1} parent=1 // pred_check_branch
      %22 = sbr.rel (0) target = $region9
    $region8: #{tpu_custom_call.1} parent=1 // pred_region
      %s24 = ssub.s32 1024, 1024
      %25 = vsyncadd [#allocation6], %s24
      %s26 = sshll.u32 [#allocation5], 4
      %s27 = int_to_ptr.vmem [resolvable:$true] %s26
      %32 = dma.hbm_to_vmem [thread:$0]  %s1, 1024, %s27, [#allocation6], 64, 64, 4
    $region9: #{tpu_custom_call.1} parent=1 // pred_fallthru
      _
    // Predicated region
    $region10: #{tpu_custom_call.1} parent=1 // pred_check
      _
    $region11: #{tpu_custom_call.1} parent=1 // pred_check_branch
      %34 = sbr.rel (0) target = $region13
    $region12: #{tpu_custom_call.1} parent=1 // pred_region
      _
    $region13: #{tpu_custom_call.1} parent=1 // pred_fallthru
      _
    // Predicated region
    $region14: #{tpu_custom_call.1} parent=1 // pred_check
      _
    $region15: #{tpu_custom_call.1} parent=1 // pred_check_branch
      %36 = sbr.rel (0) target = $region17
    $region16: #{tpu_custom_call.1} parent=1 // pred_region
      %37 = dma.done [#allocation3], 64
    $region17: #{tpu_custom_call.1} parent=1 // pred_fallthru
      _
    // Predicated region
    $region18: #{tpu_custom_call.1} parent=1 // pred_check
      _
    $region19: #{tpu_custom_call.1} parent=1 // pred_check_branch
      %39 = sbr.rel (0) target = $region21
    $region20: #{tpu_custom_call.1} parent=1 // pred_region
      %40 = dma.done [#allocation6], 1024
    $region21: #{tpu_custom_call.1} parent=1 // pred_fallthru
      _
    %v42 = vld [vmem:[#allocation2] sm:$0xf]
    %v43 = vld [vmem:[#allocation5] sm:$0xf]
    %v44 = vld [vmem:[#allocation5 + $0x4] sm:$0xf]
    %v45 = vld [vmem:[#allocation5 + $0x8] sm:$0xf]
    %v46 = vld [vmem:[#allocation5 + $0xc] sm:$0xf]
    %v47 = vld [vmem:[#allocation5 + $0x10] sm:$0xf]
    %v48 = vld [vmem:[#allocation5 + $0x14] sm:$0xf]
    %v49 = vld [vmem:[#allocation5 + $0x18] sm:$0xf]
    %v50 = vld [vmem:[#allocation5 + $0x1c] sm:$0xf]
    %v51 = vld [vmem:[#allocation5 + $0x20] sm:$0xf]
    %v52 = vld [vmem:[#allocation5 + $0x24] sm:$0xf]
    %v53 = vld [vmem:[#allocation5 + $0x28] sm:$0xf]
    %v54 = vld [vmem:[#allocation5 + $0x2c] sm:$0xf]
    %v55 = vld [vmem:[#allocation5 + $0x30] sm:$0xf]
    %v56 = vld [vmem:[#allocation5 + $0x34] sm:$0xf]
    %v57 = vld [vmem:[#allocation5 + $0x38] sm:$0xf]
    %v58 = vld [vmem:[#allocation5 + $0x3c] sm:$0xf]
    %v59 = vld [vmem:[%s2] sm:$0x1]
    %v61 = vlaneseq
    %v62 = vshrl.u32 %v61, 7
    %v63 = vsub.s32 0, %v62
    %v64 = vrot.slane %v59, %v63
    %v82 = vunpack.c.l.b16 %v43
    %v83 = vunpack.c.l.b16 %v44
    %v84 = vunpack.c.l.b16 %v45
    %v85 = vunpack.c.l.b16 %v46
    %v86 = vunpack.c.l.b16 %v47
    %v87 = vunpack.c.l.b16 %v48
    %v88 = vunpack.c.l.b16 %v49
    %v89 = vunpack.c.l.b16 %v50
    %v90 = vunpack.c.l.b16 %v51
    %v91 = vunpack.c.l.b16 %v52
    %v92 = vunpack.c.l.b16 %v53
    %v93 = vunpack.c.l.b16 %v54
    %v94 = vunpack.c.l.b16 %v55
    %v95 = vunpack.c.l.b16 %v56
    %v96 = vunpack.c.l.b16 %v57
    %v97 = vunpack.c.l.b16 %v58
    %v98 = vpack.c.b16 %v83, %v82
    %v99 = vpack.c.b16 %v85, %v84
    %v100 = vpack.c.b16 %v87, %v86
    %v101 = vpack.c.b16 %v89, %v88
    %v102 = vpack.c.b16 %v91, %v90
    %v103 = vpack.c.b16 %v93, %v92
    %v104 = vpack.c.b16 %v95, %v94
    %v105 = vpack.c.b16 %v97, %v96
    %114 = vmatprep.subr.bf16.mxu0 0
    %115 = vmatpush1.bf16.msra.mxu0 %v105
    %116 = vmatprep.subr.bf16.mxu0 0
    %117 = vmatpush1.bf16.msra.mxu0 %v104
    %118 = vmatprep.subr.bf16.mxu0 0
    %119 = vmatpush1.bf16.msra.mxu0 %v103
    %120 = vmatprep.subr.bf16.mxu0 0
    %121 = vmatpush1.bf16.msra.mxu0 %v102
    %122 = vmatprep.subr.bf16.mxu0 0
    %123 = vmatpush1.bf16.msra.mxu0 %v101
    %124 = vmatprep.subr.bf16.mxu0 0
    %125 = vmatpush1.bf16.msra.mxu0 %v100
    %126 = vmatprep.subr.bf16.mxu0 0
    %127 = vmatpush1.bf16.msra.mxu0 %v99
    %128 = vmatprep.subr.bf16.mxu0 0
    %129 = vmatpush1.bf16.msra.mxu0 %v98
    %130 = vmatprep.subr.bf16.mxu0 0
    %131 = vmatpush2.bf16.msra.mxu0 0
    %132 = vmatprep.subr.bf16.mxu0 0
    %133 = vmatpush2.bf16.msra.mxu0 0
    %134 = vmatprep.subr.bf16.mxu0 0
    %135 = vmatpush2.bf16.msra.mxu0 0
    %136 = vmatprep.subr.bf16.mxu0 0
    %137 = vmatpush2.bf16.msra.mxu0 0
    %138 = vmatprep.subr.bf16.mxu0 0
    %139 = vmatpush2.bf16.msra.mxu0 0
    %140 = vmatprep.subr.bf16.mxu0 0
    %141 = vmatpush2.bf16.msra.mxu0 0
    %142 = vmatprep.subr.bf16.mxu0 0
    %143 = vmatpush2.bf16.msra.mxu0 0
    %144 = vmatprep.subr.bf16.mxu0 0
    %145 = vmatpush2.bf16.msra.mxu0 0
    %146 = vmatprep.mubr.bf16.mxu0 0
    %147 = vmatmul.mubr.bf16.gmra.mxu0 %v42
    %v148 = vpop.f32.mrf.mxu0
    %v149 = vadd.f32 %v64, %v148
    %v150 = vpop.f32.mrf.mxu0
    %v151 = vpop.f32.mrf.mxu0
    %v152 = vpop.f32.mrf.mxu0
    %153 = vdwg.mxu0
    %154 = vst [vmem:[#allocation7] sm:$0xff] %v149
    // Predicated region
    $region22: #{tpu_custom_call.1} parent=1 // pred_check
      _
    $region23: #{tpu_custom_call.1} parent=1 // pred_check_branch
      %156 = sbr.rel (0) target = $region25
    $region24: #{tpu_custom_call.1} parent=1 // pred_region
      %s158 = ssub.s32 128, 128
      %159 = vsyncadd [#allocation4], %s158
      %s161 = sshll.u32 [#allocation7], 4
      %s162 = int_to_ptr.vmem [resolvable:$true] %s161
      %164 = dma.vmem_to_hbm [thread:$0]  %s162, 128, %s3, [#allocation4]
    $region25: #{tpu_custom_call.1} parent=1 // pred_fallthru
      _
    // Predicated region
    $region26: #{tpu_custom_call.1} parent=1 // pred_check
      _
    $region27: #{tpu_custom_call.1} parent=1 // pred_check_branch
      %166 = sbr.rel (0) target = $region29
    $region28: #{tpu_custom_call.1} parent=1 // pred_region
      %167 = dma.done [#allocation4], 128
    $region29: #{tpu_custom_call.1} parent=1 // pred_fallthru
      _
    %168 = vsyncpa [#allocation3], 1
    %169 = vsyncpa [#allocation6], 1
    %170 = vsyncpa [#allocation4], 1

</llo_original>
